<compile_context>
chip_gen: v7x
topology: tpu7x:2x2x1
jax: 0.10.0
libtpu: 0.0.40
codegen_flags: <defaults>
</compile_context>

<pallas_src>
import math
import jax
import jax.numpy as jnp
from jax.experimental import pallas as pl
from jax.experimental.pallas import tpu as pltpu

STATE_DIM = 9      # tic-tac-toe board, 3x3 flattened (state.view(-1, 9))
HIDDEN = 128
ACTION_DIM = 9


def _round_up(n, m):
    return ((n + m - 1) // m) * m


def dqn_forward_kernel(x_ref, w1_ref, b1_ref, w2_ref, b2_ref, out_ref):
    # x_ref: (tb, 9)   w1_ref: (9, 128)   b1_ref: (1, 128)
    # w2_ref: (128, 9) b2_ref: (1, 9)     out_ref: (tb, 9)
    x = x_ref[...].astype(w1_ref.dtype)
    # fc1 + ReLU (MXU matmul, f32 accumulation; bias/relu on VPU)
    h = jnp.dot(x, w1_ref[...], preferred_element_type=jnp.float32) + b1_ref[...]
    h = jnp.maximum(h, 0.0)
    # fc2 — output stays 9-wide; writeback is only the useful bytes
    q = jnp.dot(h.astype(w2_ref.dtype), w2_ref[...],
                preferred_element_type=jnp.float32) + b2_ref[...]
    out_ref[...] = q.astype(out_ref.dtype)


def dqn_forward_xla(state, params):
    """Plain-XLA path for tiny (acting-time) batches; also the reference."""
    w1, b1, w2, b2 = params
    x = state.reshape(-1, STATE_DIM).astype(jnp.float32)
    h = jnp.maximum(x @ w1.astype(jnp.float32) + b1.astype(jnp.float32), 0.0)
    return h @ w2.astype(jnp.float32) + b2.astype(jnp.float32)


def dqn_forward(state, params, block_b=8192, compute_dtype=jnp.float32,
                min_pallas_batch=16):
    """state: any float array whose elements reshape to (-1, 9).

    params: (w1 (9,128), b1 (1,128), w2 (128,9), b2 (1,9)) — x @ W + b layout
    (transposed vs. PyTorch's nn.Linear weight storage, same math).
    """
    w1, b1, w2, b2 = params
    x = state.reshape(-1, STATE_DIM).astype(jnp.float32)
    B = x.shape[0]

    # Acting-time batches (B=1..few): kernel launch + padding would dominate.
    if B < min_pallas_batch:
        return dqn_forward_xla(state, params)

    # Weights/biases: tiny one-time casts; biases stay f32 for accuracy.
    w1c = w1.astype(compute_dtype)                                   # (9, 128)
    w2c = w2.astype(compute_dtype)                                   # (128, 9)
    b1f = b1.astype(jnp.float32).reshape(1, HIDDEN)                  # (1, 128)
    b2f = b2.astype(jnp.float32).reshape(1, ACTION_DIM)              # (1, 9)

    # --- batch tiling -------------------------------------------------------
    block_b = max(8, (int(block_b) // 8) * 8)            # robustly multiple of 8
    # Force >= 2 grid steps whenever possible so the batch axis can shard
    # across both TensorCores on v7x (and the pipeline actually overlaps).
    num_tiles = max(2, pl.cdiv(B, block_b)) if B >= 16 else 1
    tb = _round_up(pl.cdiv(B, num_tiles), 8)              # multiple of 8, <= block_b
    grid_b = pl.cdiv(B, tb)
    Bp = grid_b * tb
    if Bp != B:
        x = jnp.pad(x, ((0, Bp - B), (0, 0)))             # row padding only

    elem = jnp.dtype(compute_dtype).itemsize
    flops = 2 * Bp * (STATE_DIM * HIDDEN + HIDDEN * ACTION_DIM)
    bytes_accessed = (4 * Bp * STATE_DIM + 4 * Bp * ACTION_DIM
                      + elem * (STATE_DIM * HIDDEN + HIDDEN * ACTION_DIM)
                      + 4 * (HIDDEN + ACTION_DIM))

    out = pl.pallas_call(
        dqn_forward_kernel,
        out_shape=jax.ShapeDtypeStruct((Bp, ACTION_DIM), jnp.float32),
        grid_spec=pl.GridSpec(
            grid=(grid_b,),
            in_specs=[
                pl.BlockSpec((tb, STATE_DIM), lambda i: (i, 0)),     # x streamed
                pl.BlockSpec((STATE_DIM, HIDDEN), lambda i: (0, 0)),  # weights stay
                pl.BlockSpec((1, HIDDEN), lambda i: (0, 0)),          #   VMEM-resident
                pl.BlockSpec((HIDDEN, ACTION_DIM), lambda i: (0, 0)),
                pl.BlockSpec((1, ACTION_DIM), lambda i: (0, 0)),
            ],
            out_specs=pl.BlockSpec((tb, ACTION_DIM), lambda i: (i, 0)),
        ),
        compiler_params=pltpu.CompilerParams(
            dimension_semantics=("parallel",)),   # shards batch across TCs on v7x
        cost_estimate=pl.CostEstimate(
            flops=flops, transcendentals=0, bytes_accessed=bytes_accessed),
    )(x, w1c, b1f, w2c, b2f)

    # Strip batch row padding only (no column slice needed anymore).
    return out[:B]


def init_params(key):
    """Deterministic init mimicking nn.Linear default (U[-1/sqrt(fan_in), +])."""
    k1, k2, k3, k4 = jax.random.split(key, 4)
    bound1 = 1.0 / math.sqrt(STATE_DIM)
    bound2 = 1.0 / math.sqrt(HIDDEN)
    w1 = jax.random.uniform(k1, (STATE_DIM, HIDDEN), jnp.float32, -bound1, bound1)
    b1 = jax.random.uniform(k2, (1, HIDDEN), jnp.float32, -bound1, bound1)
    w2 = jax.random.uniform(k3, (HIDDEN, ACTION_DIM), jnp.float32, -bound2, bound2)
    b2 = jax.random.uniform(k4, (1, ACTION_DIM), jnp.float32, -bound2, bound2)
    return w1, b1, w2, b2


if __name__ == "__main__":
    key = jax.random.PRNGKey(0)
    pkey, k1, k2, k3 = jax.random.split(key, 4)
    params = init_params(pkey)

    # 1) Tiny acting-time batch (B=2) -> plain-XLA fallback path.
    state_small = jax.random.uniform(k1, (2, 3, 3), jnp.float32, -1.0, 1.0)
    q_small = dqn_forward(state_small, params)
    jax.block_until_ready(q_small)
    assert q_small.shape == (2, ACTION_DIM)
    assert jnp.allclose(q_small, dqn_forward_xla(state_small, params),
                        atol=1e-5, rtol=1e-5)

    # 2) Multi-step grid + row padding through the Pallas kernel (B=40, tb=24).
    state_mid = jax.random.uniform(k2, (40, 3, 3), jnp.float32, -1.0, 1.0)
    q_mid = dqn_forward(state_mid, params, block_b=16)
    jax.block_until_ready(q_mid)
    assert q_mid.shape == (40, ACTION_DIM)
    assert jnp.allclose(q_mid, dqn_forward_xla(state_mid, params),
                        atol=1e-5, rtol=1e-5)

    # 3) Default tiling through the Pallas kernel (replay-buffer sized batch).
    state_big = jax.random.uniform(k3, (256, 3, 3), jnp.float32, -1.0, 1.0)
    q_big = dqn_forward(state_big, params)
    jax.block_until_ready(q_big)
    assert q_big.shape == (256, ACTION_DIM)
    assert jnp.allclose(q_big, dqn_forward_xla(state_big, params),
                        atol=1e-5, rtol=1e-5)

    # 4) bf16-MXU-operand variant (recommended for v5e); looser tolerance.
    q_bf16 = dqn_forward(state_big, params, compute_dtype=jnp.bfloat16)
    jax.block_until_ready(q_bf16)
    assert q_bf16.shape == (256, ACTION_DIM)
    assert jnp.allclose(q_bf16, dqn_forward_xla(state_big, params),
                        atol=3e-2, rtol=3e-2)

    # TODO(synk): epsilon-greedy action selection, ReplayBuffer, and the Adam
    # training update are host-side control flow and are not part of forward().
    print("KERNEL_OK")
</pallas_src>

<mosaic_0001>
module attributes {stable_mosaic.version = 11 : i64} {
  func.func @dqn_forward_kernel(%arg0: i32, %arg1: memref<16x9xf32, #tpu.memory_space<vmem>>, %arg2: memref<9x128xf32, #tpu.memory_space<vmem>>, %arg3: memref<1x128xf32, #tpu.memory_space<vmem>>, %arg4: memref<128x9xf32, #tpu.memory_space<vmem>>, %arg5: memref<1x9xf32, #tpu.memory_space<vmem>>, %arg6: memref<16x9xf32, #tpu.memory_space<vmem>>) attributes {dimension_semantics = [#tpu.dimension_semantics<parallel>], iteration_bounds = array<i64: 3>, scalar_prefetch = 0 : i64, scratch_operands = 0 : i64, tpu.core_type = #tpu.core_type<tc>, window_params = [{transform_indices = @transform_0, window_bounds = array<i64: 16, 9>}, {pipeline_mode = #tpu.pipeline_mode<synchronous>, transform_indices = @transform_1, window_bounds = array<i64: 9, 128>}, {pipeline_mode = #tpu.pipeline_mode<synchronous>, transform_indices = @transform_2, window_bounds = array<i64: 1, 128>}, {pipeline_mode = #tpu.pipeline_mode<synchronous>, transform_indices = @transform_3, window_bounds = array<i64: 128, 9>}, {pipeline_mode = #tpu.pipeline_mode<synchronous>, transform_indices = @transform_4, window_bounds = array<i64: 1, 9>}, {transform_indices = @transform_5, window_bounds = array<i64: 16, 9>}]} {
    %c0 = arith.constant 0 : index
    %c0_0 = arith.constant 0 : index
    %0 = vector.load %arg1[%c0, %c0_0] : memref<16x9xf32, #tpu.memory_space<vmem>>, vector<16x9xf32>
    %c0_1 = arith.constant 0 : index
    %c0_2 = arith.constant 0 : index
    %1 = vector.load %arg2[%c0_1, %c0_2] : memref<9x128xf32, #tpu.memory_space<vmem>>, vector<9x128xf32>
    %cst = arith.constant dense<0.000000e+00> : vector<16x128xf32>
    %2 = tpu.matmul %0, %1, %cst {dimension_numbers = #tpu.dot_dimension_numbers<[1], [0], [0], [1], [0, 0, 1, 1], [], []>} : vector<16x9xf32>, vector<9x128xf32>, vector<16x128xf32> -> vector<16x128xf32>
    %c0_3 = arith.constant 0 : index
    %c0_4 = arith.constant 0 : index
    %3 = vector.load %arg3[%c0_3, %c0_4] : memref<1x128xf32, #tpu.memory_space<vmem>>, vector<1x128xf32>
    %4 = vector.broadcast %3 : vector<1x128xf32> to vector<16x128xf32>
    %5 = arith.addf %2, %4 : vector<16x128xf32>
    %cst_5 = arith.constant 0.000000e+00 : f32
    %6 = vector.broadcast %cst_5 : f32 to vector<16x128xf32>
    %7 = arith.maximumf %5, %6 : vector<16x128xf32>
    %c0_6 = arith.constant 0 : index
    %c0_7 = arith.constant 0 : index
    %8 = vector.load %arg4[%c0_6, %c0_7] : memref<128x9xf32, #tpu.memory_space<vmem>>, vector<128x9xf32>
    %cst_8 = arith.constant dense<0.000000e+00> : vector<16x9xf32>
    %9 = tpu.matmul %7, %8, %cst_8 {dimension_numbers = #tpu.dot_dimension_numbers<[1], [0], [0], [1], [0, 0, 1, 1], [], []>} : vector<16x128xf32>, vector<128x9xf32>, vector<16x9xf32> -> vector<16x9xf32>
    %c0_9 = arith.constant 0 : index
    %c0_10 = arith.constant 0 : index
    %10 = vector.load %arg5[%c0_9, %c0_10] : memref<1x9xf32, #tpu.memory_space<vmem>>, vector<1x9xf32>
    %11 = vector.broadcast %10 : vector<1x9xf32> to vector<16x9xf32>
    %12 = arith.addf %9, %11 : vector<16x9xf32>
    %c0_11 = arith.constant 0 : index
    %c0_12 = arith.constant 0 : index
    %13 = vector.load %arg6[%c0_11, %c0_12] : memref<16x9xf32, #tpu.memory_space<vmem>>, vector<16x9xf32>
    tpu.vector_store %arg6[%c0_11, %c0_12], %12 {strides = array<i32>} : memref<16x9xf32, #tpu.memory_space<vmem>>, vector<16x9xf32>,
    return
  }
  func.func @transform_0(%arg0: i32) -> (i32, i32) {
    %c0_i32 = arith.constant 0 : i32
    %c0_i32_0 = arith.constant 0 : i32
    return %arg0, %c0_i32 : i32, i32
  }
  func.func @transform_1(%arg0: i32) -> (i32, i32) {
    %c0_i32 = arith.constant 0 : i32
    %c0_i32_0 = arith.constant 0 : i32
    %c0_i32_1 = arith.constant 0 : i32
    return %c0_i32, %c0_i32_0 : i32, i32
  }
  func.func @transform_2(%arg0: i32) -> (i32, i32) {
    %c0_i32 = arith.constant 0 : i32
    %c0_i32_0 = arith.constant 0 : i32
    %c0_i32_1 = arith.constant 0 : i32
    return %c0_i32, %c0_i32_0 : i32, i32
  }
  func.func @transform_3(%arg0: i32) -> (i32, i32) {
    %c0_i32 = arith.constant 0 : i32
    %c0_i32_0 = arith.constant 0 : i32
    %c0_i32_1 = arith.constant 0 : i32
    return %c0_i32, %c0_i32_0 : i32, i32
  }
  func.func @transform_4(%arg0: i32) -> (i32, i32) {
    %c0_i32 = arith.constant 0 : i32
    %c0_i32_0 = arith.constant 0 : i32
    %c0_i32_1 = arith.constant 0 : i32
    return %c0_i32, %c0_i32_0 : i32, i32
  }
  func.func @transform_5(%arg0: i32) -> (i32, i32) {
    %c0_i32 = arith.constant 0 : i32
    %c0_i32_0 = arith.constant 0 : i32
    return %arg0, %c0_i32 : i32, i32
  }
}

</mosaic_0001>

<llo_original>
// kernel: tpu_custom_call.1
$region0: #{tpu_custom_call.1}
  #allocation0 [shape = 'u32[]', space=smem, size = 0x4, offset = 0x4, fixed_abs, tag = 'smem constant byte address 0x4 - core index']
  #allocation1 [shape = 'u32[144,128]{1,0:T(1,128)}', space=vmem, size = 0x12000, scoped, tag = 'internal scratch']
  %s0 = inlined_call_operand.vmem [shape: f32[48,9], index: 0, kind: input, shape index: {}]
  %s1 = inlined_call_operand.vmem [shape: f32[9,128], index: 1, kind: input, shape index: {}]
  %s2 = inlined_call_operand.vmem [shape: f32[1,128], index: 2, kind: input, shape index: {}]
  %s3 = inlined_call_operand.vmem [shape: f32[128,9], index: 3, kind: input, shape index: {}]
  %s4 = inlined_call_operand.vmem [shape: f32[1,9], index: 4, kind: input, shape index: {}]
  %s5 = inlined_call_operand.vmem [shape: f32[48,9], index: 5, kind: output, shape index: {}]
  %s6 = sld [smem:[#allocation0]]
  $region53: #{tpu_custom_call.1} parent=0
    _
  %s8 = ssub.s32 1, %s6
  %s9 = scalar_select 0, %s8, %s6
  loop: start=0, step=1, limit=5
  $region2: #{tpu_custom_call.1} parent=0 // loop_pre_header
    _
  $region3: #{tpu_custom_call.1} parent=0 // loop_header
    %s11 = sphi 0, %s15
    %p12 = scmp.ge.s32.totalorder %s11, 5
    %s21 = sphi 0, %s23
    %s24 = sphi 0, %s21
    %s25 = sphi 0, %s24
    %s41 = sphi 0, %s25
    %s45 = sphi 0, %s45
    %s47 = sphi 0, %s45
    %s48 = sphi 0, %s47
    %s62 = sphi 0, %s48
    %s66 = sphi 0, %s66
    %s68 = sphi 0, %s66
    %s69 = sphi 0, %s68
    %s83 = sphi 0, %s69
    %s87 = sphi 0, %s87
    %s89 = sphi 0, %s87
    %s90 = sphi 0, %s89
    %s104 = sphi 0, %s90
    %s108 = sphi 0, %s108
    %s110 = sphi 0, %s108
    %s111 = sphi 0, %s110
    %s125 = sphi 0, %s111
    %s131 = sphi 0, %s133
    %s134 = sphi 0, %s131
    %s135 = sphi 0, %s134
    %s151 = sphi 0, %s135
  $region4: #{tpu_custom_call.1} parent=0 // loop_header_branch
    %14 = sbr.rel (%p12) target = $region8
  $region5: #{tpu_custom_call.1} parent=0 // loop_body
    %s16 = ssub.s32 %s11, 1
    %s17 = ssub.s32 %s11, 2
    %s18 = sadd.s32 %s11, 1
    %s19 = ssub.s32 %s11, %s18
    %p20 = scmp.eq.s32.totalorder %s19, 0
    %s22 = sadd.s32 %s21, 1
    %s23 = scalar_select %p20, %s21, %s22
    %p26 = pneg %p20
    %p27 = scmp.eq.s32.totalorder %s11, 2
    %p28 = por %p26, %p27
    %p29 = scmp.ne.s32.totalorder %s21, %s24
    %p30 = scmp.eq.s32.totalorder %s11, 0
    %p31 = por %p29, %p30
    %p32 = scmp.ne.s32.totalorder %s21, %s24
    %p33 = scmp.eq.s32.totalorder %s16, 2
    %p34 = por %p32, %p33
    %p35 = scmp.ne.s32.totalorder %s24, %s25
    %p36 = scmp.eq.s32.totalorder %s16, 0
    %p37 = por %p35, %p36
    %p38 = scmp.ne.s32.totalorder %s24, %s25
    %p39 = scmp.eq.s32.totalorder %s17, 2
    %p40 = por %p38, %p39
    %p42 = scmp.ne.s32.totalorder %s25, %s41
    %p43 = scmp.eq.s32.totalorder %s17, 0
    %p44 = por %p42, %p43
    %s46 = sadd.s32 %s45, 1
    %p49 = scmp.eq.s32.totalorder %s11, 2
    %p50 = scmp.ne.s32.totalorder %s45, %s47
    %p51 = scmp.eq.s32.totalorder %s11, 0
    %p52 = por %p50, %p51
    %p53 = scmp.ne.s32.totalorder %s45, %s47
    %p54 = scmp.eq.s32.totalorder %s16, 2
    %p55 = por %p53, %p54
    %p56 = scmp.ne.s32.totalorder %s47, %s48
    %p57 = scmp.eq.s32.totalorder %s16, 0
    %p58 = por %p56, %p57
    %p59 = scmp.ne.s32.totalorder %s47, %s48
    %p60 = scmp.eq.s32.totalorder %s17, 2
    %p61 = por %p59, %p60
    %p63 = scmp.ne.s32.totalorder %s48, %s62
    %p64 = scmp.eq.s32.totalorder %s17, 0
    %p65 = por %p63, %p64
    %s67 = sadd.s32 %s66, 1
    %p70 = scmp.eq.s32.totalorder %s11, 2
    %p71 = scmp.ne.s32.totalorder %s66, %s68
    %p72 = scmp.eq.s32.totalorder %s11, 0
    %p73 = por %p71, %p72
    %p74 = scmp.ne.s32.totalorder %s66, %s68
    %p75 = scmp.eq.s32.totalorder %s16, 2
    %p76 = por %p74, %p75
    %p77 = scmp.ne.s32.totalorder %s68, %s69
    %p78 = scmp.eq.s32.totalorder %s16, 0
    %p79 = por %p77, %p78
    %p80 = scmp.ne.s32.totalorder %s68, %s69
    %p81 = scmp.eq.s32.totalorder %s17, 2
    %p82 = por %p80, %p81
    %p84 = scmp.ne.s32.totalorder %s69, %s83
    %p85 = scmp.eq.s32.totalorder %s17, 0
    %p86 = por %p84, %p85
    %s88 = sadd.s32 %s87, 1
    %p91 = scmp.eq.s32.totalorder %s11, 2
    %p92 = scmp.ne.s32.totalorder %s87, %s89
    %p93 = scmp.eq.s32.totalorder %s11, 0
    %p94 = por %p92, %p93
    %p95 = scmp.ne.s32.totalorder %s87, %s89
    %p96 = scmp.eq.s32.totalorder %s16, 2
    %p97 = por %p95, %p96
    %p98 = scmp.ne.s32.totalorder %s89, %s90
    %p99 = scmp.eq.s32.totalorder %s16, 0
    %p100 = por %p98, %p99
    %p101 = scmp.ne.s32.totalorder %s89, %s90
    %p102 = scmp.eq.s32.totalorder %s17, 2
    %p103 = por %p101, %p102
    %p105 = scmp.ne.s32.totalorder %s90, %s104
    %p106 = scmp.eq.s32.totalorder %s17, 0
    %p107 = por %p105, %p106
    %s109 = sadd.s32 %s108, 1
    %p112 = scmp.eq.s32.totalorder %s11, 2
    %p113 = scmp.ne.s32.totalorder %s108, %s110
    %p114 = scmp.eq.s32.totalorder %s11, 0
    %p115 = por %p113, %p114
    %p116 = scmp.ne.s32.totalorder %s108, %s110
    %p117 = scmp.eq.s32.totalorder %s16, 2
    %p118 = por %p116, %p117
    %p119 = scmp.ne.s32.totalorder %s110, %s111
    %p120 = scmp.eq.s32.totalorder %s16, 0
    %p121 = por %p119, %p120
    %p122 = scmp.ne.s32.totalorder %s110, %s111
    %p123 = scmp.eq.s32.totalorder %s17, 2
    %p124 = por %p122, %p123
    %p126 = scmp.ne.s32.totalorder %s111, %s125
    %p127 = scmp.eq.s32.totalorder %s17, 0
    %p128 = por %p126, %p127
    %s129 = ssub.s32 %s11, %s18
    %p130 = scmp.eq.s32.totalorder %s129, 0
    %s132 = sadd.s32 %s131, 1
    %s133 = scalar_select %p130, %s131, %s132
    %p136 = pneg %p130
    %p137 = scmp.eq.s32.totalorder %s11, 2
    %p138 = por %p136, %p137
    %p139 = scmp.ne.s32.totalorder %s131, %s134
    %p140 = scmp.eq.s32.totalorder %s11, 0
    %p141 = por %p139, %p140
    %p142 = scmp.ne.s32.totalorder %s131, %s134
    %p143 = scmp.eq.s32.totalorder %s16, 2
    %p144 = por %p142, %p143
    %p145 = scmp.ne.s32.totalorder %s134, %s135
    %p146 = scmp.eq.s32.totalorder %s16, 0
    %p147 = por %p145, %p146
    %p148 = scmp.ne.s32.totalorder %s134, %s135
    %p149 = scmp.eq.s32.totalorder %s17, 2
    %p150 = por %p148, %p149
    %p152 = scmp.ne.s32.totalorder %s135, %s151
    %p153 = scmp.eq.s32.totalorder %s17, 0
    %p154 = por %p152, %p153
    %p155 = scmp.le.s32.totalorder 1, %s11
    %p156 = scmp.lt.s32.totalorder %s11, 4
    %p157 = pnand %p155, %p156
    %p158 = pneg %p157
    // Predicated region
    $region9: #{tpu_custom_call.1} parent=5 // pred_check
      _
    $region10: #{tpu_custom_call.1} parent=5 // pred_check_branch
      %160 = sbr.rel (%p157) target = $region12
    $region11: #{tpu_custom_call.1} parent=5 // pred_region
      %s161 = ssub.s32 %s11, 1
      // Predicated region
      $region13: #{tpu_custom_call.1} parent=11 // pred_check
        %p162 = pneg %p58
      $region14: #{tpu_custom_call.1} parent=11 // pred_check_branch
        %164 = sbr.rel (%p162) target = $region16
      $region15: #{tpu_custom_call.1} parent=11 // pred_region
        _
      $region16: #{tpu_custom_call.1} parent=11 // pred_fallthru
        _
      // Predicated region
      $region17: #{tpu_custom_call.1} parent=11 // pred_check
        %p165 = pneg %p79
      $region18: #{tpu_custom_call.1} parent=11 // pred_check_branch
        %167 = sbr.rel (%p165) target = $region20
      $region19: #{tpu_custom_call.1} parent=11 // pred_region
        _
      $region20: #{tpu_custom_call.1} parent=11 // pred_fallthru
        _
      // Predicated region
      $region21: #{tpu_custom_call.1} parent=11 // pred_check
        %p168 = pneg %p100
      $region22: #{tpu_custom_call.1} parent=11 // pred_check_branch
        %170 = sbr.rel (%p168) target = $region24
      $region23: #{tpu_custom_call.1} parent=11 // pred_region
        _
      $region24: #{tpu_custom_call.1} parent=11 // pred_fallthru
        _
      // Predicated region
      $region25: #{tpu_custom_call.1} parent=11 // pred_check
        %p171 = pneg %p121
      $region26: #{tpu_custom_call.1} parent=11 // pred_check_branch
        %173 = sbr.rel (%p171) target = $region28
      $region27: #{tpu_custom_call.1} parent=11 // pred_region
        _
      $region28: #{tpu_custom_call.1} parent=11 // pred_fallthru
        _
    $region12: #{tpu_custom_call.1} parent=5 // pred_fallthru
      _
    %p174 = scmp.lt.s32.totalorder %s11, 3
    // Predicated region
    $region29: #{tpu_custom_call.1} parent=5 // pred_check
      %p175 = pneg %p174
    $region30: #{tpu_custom_call.1} parent=5 // pred_check_branch
      %177 = sbr.rel (%p175) target = $region32
    $region31: #{tpu_custom_call.1} parent=5 // pred_region
      // Predicated region
      $region33: #{tpu_custom_call.1} parent=31 // pred_check
        %p178 = pneg %p31
      $region34: #{tpu_custom_call.1} parent=31 // pred_check_branch
        %180 = sbr.rel (%p178) target = $region36
      $region35: #{tpu_custom_call.1} parent=31 // pred_region
        %s181 = smul.u32 2, %s11
        %p182 = scmp.lt.s32.totalorder %s181, 5
        %s183 = scalar_select %p182, %s181, 5
        %s184 = smul.addr %s183, 8
        %s185 = scalar_lea.vmem %s0, %s184
        %s186 = smul.u32 2, %s11
      $region36: #{tpu_custom_call.1} parent=31 // pred_fallthru
        _
    $region32: #{tpu_custom_call.1} parent=5 // pred_fallthru
      _
    %p187 = scmp.le.s32.totalorder 1, %s11
    %p188 = scmp.lt.s32.totalorder %s11, 4
    %p189 = pnand %p187, %p188
    %p190 = pneg %p189
    // Predicated region
    $region37: #{tpu_custom_call.1} parent=5 // pred_check
      _
    $region38: #{tpu_custom_call.1} parent=5 // pred_check_branch
      %192 = sbr.rel (%p189) target = $region40
    $region39: #{tpu_custom_call.1} parent=5 // pred_region
      %s193 = ssub.s32 %s11, 1
      %s194 = smul.u32 2, %s16
      %p195 = scmp.lt.s32.totalorder %s194, 5
      %s196 = scalar_select %p195, %s194, 5
      %s197 = smul.addr %s196, 8
      %s198 = scalar_lea.vmem %s0, %s197
      %p199 = pneg %p37
      %p200 = pneg %p34
      %p201 = pneg %p58
      %p202 = pneg %p55
      %p203 = pneg %p79
      %p204 = pneg %p76
      %p205 = pneg %p100
      %p206 = pneg %p97
      %p207 = pneg %p121
      %p208 = pneg %p118
      %p209 = pneg %p147
      %p210 = pneg %p144
      %s211 = smul.u32 2, %s16
      %p212 = scmp.lt.s32.totalorder %s211, 5
      %s213 = scalar_select %p212, %s211, 5
      %s214 = smul.addr %s213, 8
      %s215 = scalar_lea.vmem %s5, %s214
      %s216 = smul.u32 2, %s16
      %p217 = scmp.lt.s32.totalorder %s216, 5
      %s218 = scalar_select %p217, %s216, 5
      %s219 = smul.addr %s218, 8
      %s220 = scalar_lea.vmem %s0, %s219
      %s221 = smul.u32 2, %s16
      %s222 = smul.u32 2, %s16
      %p223 = scmp.lt.s32.totalorder %s222, 5
      %s224 = scalar_select %p223, %s222, 5
      %s225 = smul.addr %s224, 8
      %s226 = scalar_lea.vmem %s5, %s225
      %s227 = smul.u32 2, %s16
      %v228 = vld [vmem:[%s220] sm:$0xff]
      %v229 = vld [vmem:[%s220 + $0x8] sm:$0xff]
      %v230 = vld [vmem:[%s1] sm:$0xff]
      %v231 = vld [vmem:[%s1 + $0x8] sm:$0x1]
      %v232 = vld [vmem:[%s2] sm:$0x1]
      %v234 = vlaneseq
      %v235 = vshrl.u32 %v234, 7
      %v236 = vsub.s32 0, %v235
      %v237 = vrot.slane %v232, %v236
      %vm239 = vcmask 72704
      %v241 = vsel %vm239, %v228, 0
      %v244 = vsel %vm239, %v229, 0
      %vm246 = vcmask 1040384
      %v248 = vsel %vm246, %v231, 0
      %250 = vmatprep.subr.mxu0 0.0
      %251 = vmatpush1.msra.mxu0 %v230
      %252 = vmatprep.subr.mxu0 0.0
      %253 = vmatpush1.msra.mxu0 %v248
      %254 = vmatprep.subr.mxu0 0.0
      %255 = vmatpush1.msra.mxu0 0.0
      %256 = vmatprep.subr.mxu0 0.0
      %257 = vmatpush1.msra.mxu0 0.0
      %258 = vmatprep.subr.mxu0 0.0
      %259 = vmatpush1.msra.mxu0 0.0
      %260 = vmatprep.subr.mxu0 0.0
      %261 = vmatpush1.msra.mxu0 0.0
      %262 = vmatprep.subr.mxu0 0.0
      %263 = vmatpush1.msra.mxu0 0.0
      %264 = vmatprep.subr.mxu0 0.0
      %265 = vmatpush1.msra.mxu0 0.0
      %266 = vmatprep.subr.mxu0 0.0
      %267 = vmatpush1.msra.mxu0 0.0
      %268 = vmatprep.subr.mxu0 0.0
      %269 = vmatpush1.msra.mxu0 0.0
      %270 = vmatprep.subr.mxu0 0.0
      %271 = vmatpush1.msra.mxu0 0.0
      %272 = vmatprep.subr.mxu0 0.0
      %273 = vmatpush1.msra.mxu0 0.0
      %274 = vmatprep.subr.mxu0 0.0
      %275 = vmatpush1.msra.mxu0 0.0
      %276 = vmatprep.subr.mxu0 0.0
      %277 = vmatpush1.msra.mxu0 0.0
      %278 = vmatprep.subr.mxu0 0.0
      %279 = vmatpush1.msra.mxu0 0.0
      %280 = vmatprep.subr.mxu0 0.0
      %281 = vmatpush1.msra.mxu0 0.0
      %282 = vmatprep.subr.mxu0 0.0
      %283 = vmatpush1.msra.mxu0 0.0
      %284 = vmatprep.subr.mxu0 0.0
      %285 = vmatpush1.msra.mxu0 0.0
      %286 = vmatprep.subr.mxu0 0.0
      %287 = vmatpush1.msra.mxu0 0.0
      %288 = vmatprep.subr.mxu0 0.0
      %289 = vmatpush1.msra.mxu0 0.0
      %290 = vmatprep.subr.mxu0 0.0
      %291 = vmatpush1.msra.mxu0 0.0
      %292 = vmatprep.subr.mxu0 0.0
      %293 = vmatpush1.msra.mxu0 0.0
      %294 = vmatprep.subr.mxu0 0.0
      %295 = vmatpush1.msra.mxu0 0.0
      %296 = vmatprep.subr.mxu0 0.0
      %297 = vmatpush1.msra.mxu0 0.0
      %298 = vmatprep.subr.mxu0 0.0
      %299 = vmatpush1.msra.mxu0 0.0
      %300 = vmatprep.subr.mxu0 0.0
      %301 = vmatpush1.msra.mxu0 0.0
      %302 = vmatprep.subr.mxu0 0.0
      %303 = vmatpush1.msra.mxu0 0.0
      %304 = vmatprep.subr.mxu0 0.0
      %305 = vmatpush1.msra.mxu0 0.0
      %306 = vmatprep.subr.mxu0 0.0
      %307 = vmatpush1.msra.mxu0 0.0
      %308 = vmatprep.subr.mxu0 0.0
      %309 = vmatpush1.msra.mxu0 0.0
      %310 = vmatprep.subr.mxu0 0.0
      %311 = vmatpush1.msra.mxu0 0.0
      %312 = vmatprep.subr.mxu0 0.0
      %313 = vmatpush1.msra.mxu0 0.0
      %314 = vmatprep.mubr.f32.mxu0 0.0
      %315 = vmatmul.mubr.f32.gmra.mrb[0].mxu0 %v241
      %v316 = vpop.f32.mrb[0].mxu0
      %v317 = vadd.f32 %v237, %v316
      %v318 = vpop.f32.mrb[0].mxu0
      %319 = vmatprep.mubr.f32.mxu0 0.0
      %320 = vmatmul.mubr.f32.gmra.mrb[0].mxu0 %v244
      %v321 = vpop.f32.mrb[0].mxu0
      %v322 = vadd.f32 %v237, %v321
      %v323 = vpop.f32.mrb[0].mxu0
      %324 = vdwg.mxu0
      %v325 = vmax.f32 %v317, 0.0
      %v326 = vmax.f32 %v322, 0.0
      %v327 = vld [vmem:[%s3] sm:$0xff]
      %v328 = vld [vmem:[%s3 + $0x8] sm:$0xff]
      %v329 = vld [vmem:[%s3 + $0x10] sm:$0xff]
      %v330 = vld [vmem:[%s3 + $0x18] sm:$0xff]
      %v331 = vld [vmem:[%s3 + $0x20] sm:$0xff]
      %v332 = vld [vmem:[%s3 + $0x28] sm:$0xff]
      %v333 = vld [vmem:[%s3 + $0x30] sm:$0xff]
      %v334 = vld [vmem:[%s3 + $0x38] sm:$0xff]
      %v335 = vld [vmem:[%s3 + $0x40] sm:$0xff]
      %v336 = vld [vmem:[%s3 + $0x48] sm:$0xff]
      %v337 = vld [vmem:[%s3 + $0x50] sm:$0xff]
      %v338 = vld [vmem:[%s3 + $0x58] sm:$0xff]
      %v339 = vld [vmem:[%s3 + $0x60] sm:$0xff]
      %v340 = vld [vmem:[%s3 + $0x68] sm:$0xff]
      %v341 = vld [vmem:[%s3 + $0x70] sm:$0xff]
      %v342 = vld [vmem:[%s3 + $0x78] sm:$0xff]
      %v343 = vld [vmem:[%s4] sm:$0x1]
      %v345 = vlaneseq
      %v346 = vshrl.u32 %v345, 7
      %v347 = vsub.s32 0, %v346
      %v348 = vrot.slane %v343, %v347
      %350 = vmatprep.subr.mxu0 0.0
      %351 = vmatpush1.msra.mxu0 %v327
      %352 = vmatprep.subr.mxu0 0.0
      %353 = vmatpush1.msra.mxu0 %v328
      %354 = vmatprep.subr.mxu0 0.0
      %355 = vmatpush1.msra.mxu0 %v329
      %356 = vmatprep.subr.mxu0 0.0
      %357 = vmatpush1.msra.mxu0 %v330
      %358 = vmatprep.subr.mxu0 0.0
      %359 = vmatpush1.msra.mxu0 %v331
      %360 = vmatprep.subr.mxu0 0.0
      %361 = vmatpush1.msra.mxu0 %v332
      %362 = vmatprep.subr.mxu0 0.0
      %363 = vmatpush1.msra.mxu0 %v333
      %364 = vmatprep.subr.mxu0 0.0
      %365 = vmatpush1.msra.mxu0 %v334
      %366 = vmatprep.subr.mxu0 0.0
      %367 = vmatpush1.msra.mxu0 %v335
      %368 = vmatprep.subr.mxu0 0.0
      %369 = vmatpush1.msra.mxu0 %v336
      %370 = vmatprep.subr.mxu0 0.0
      %371 = vmatpush1.msra.mxu0 %v337
      %372 = vmatprep.subr.mxu0 0.0
      %373 = vmatpush1.msra.mxu0 %v338
      %374 = vmatprep.subr.mxu0 0.0
      %375 = vmatpush1.msra.mxu0 %v339
      %376 = vmatprep.subr.mxu0 0.0
      %377 = vmatpush1.msra.mxu0 %v340
      %378 = vmatprep.subr.mxu0 0.0
      %379 = vmatpush1.msra.mxu0 %v341
      %380 = vmatprep.subr.mxu0 0.0
      %381 = vmatpush1.msra.mxu0 %v342
      %382 = vmatprep.subr.mxu0 0.0
      %383 = vmatpush1.msra.mxu0 0.0
      %384 = vmatprep.subr.mxu0 0.0
      %385 = vmatpush1.msra.mxu0 0.0
      %386 = vmatprep.subr.mxu0 0.0
      %387 = vmatpush1.msra.mxu0 0.0
      %388 = vmatprep.subr.mxu0 0.0
      %389 = vmatpush1.msra.mxu0 0.0
      %390 = vmatprep.subr.mxu0 0.0
      %391 = vmatpush1.msra.mxu0 0.0
      %392 = vmatprep.subr.mxu0 0.0
      %393 = vmatpush1.msra.mxu0 0.0
      %394 = vmatprep.subr.mxu0 0.0
      %395 = vmatpush1.msra.mxu0 0.0
      %396 = vmatprep.subr.mxu0 0.0
      %397 = vmatpush1.msra.mxu0 0.0
      %398 = vmatprep.subr.mxu0 0.0
      %399 = vmatpush1.msra.mxu0 0.0
      %400 = vmatprep.subr.mxu0 0.0
      %401 = vmatpush1.msra.mxu0 0.0
      %402 = vmatprep.subr.mxu0 0.0
      %403 = vmatpush1.msra.mxu0 0.0
      %404 = vmatprep.subr.mxu0 0.0
      %405 = vmatpush1.msra.mxu0 0.0
      %406 = vmatprep.subr.mxu0 0.0
      %407 = vmatpush1.msra.mxu0 0.0
      %408 = vmatprep.subr.mxu0 0.0
      %409 = vmatpush1.msra.mxu0 0.0
      %410 = vmatprep.subr.mxu0 0.0
      %411 = vmatpush1.msra.mxu0 0.0
      %412 = vmatprep.subr.mxu0 0.0
      %413 = vmatpush1.msra.mxu0 0.0
      %414 = vmatprep.mubr.f32.mxu0 0.0
      %415 = vmatmul.mubr.f32.gmra.mrb[0].mxu0 %v325
      %v416 = vpop.f32.mrb[0].mxu0
      %v417 = vadd.f32 %v348, %v416
      %v418 = vpop.f32.mrb[0].mxu0
      %419 = vmatprep.mubr.f32.mxu0 0.0
      %420 = vmatmul.mubr.f32.gmra.mrb[0].mxu0 %v326
      %v421 = vpop.f32.mrb[0].mxu0
      %v422 = vadd.f32 %v348, %v421
      %v423 = vpop.f32.mrb[0].mxu0
      %424 = vdwg.mxu0
      %425 = vst.msk [vmem:[%s226] sm:$0xff] %vm239, %v417
      %426 = vst.msk [vmem:[%s226 + $0x8] sm:$0xff] %vm239, %v422
      %s427 = smul.u32 2, %s16
      %p428 = scmp.lt.s32.totalorder %s427, 5
      %s429 = scalar_select %p428, %s427, 5
      %s430 = smul.addr %s429, 8
      %s431 = scalar_lea.vmem %s5, %s430
      // Predicated region
      $region41: #{tpu_custom_call.1} parent=39 // pred_check
        %p432 = pneg %p144
      $region42: #{tpu_custom_call.1} parent=39 // pred_check_branch
        %434 = sbr.rel (%p432) target = $region44
      $region43: #{tpu_custom_call.1} parent=39 // pred_region
        %s435 = smul.u32 2, %s16
      $region44: #{tpu_custom_call.1} parent=39 // pred_fallthru
        _
    $region40: #{tpu_custom_call.1} parent=5 // pred_fallthru
      _
    %p436 = scmp.le.s32.totalorder 2, %s11
    // Predicated region
    $region45: #{tpu_custom_call.1} parent=5 // pred_check
      %p437 = pneg %p436
    $region46: #{tpu_custom_call.1} parent=5 // pred_check_branch
      %439 = sbr.rel (%p437) target = $region48
    $region47: #{tpu_custom_call.1} parent=5 // pred_region
      %s440 = ssub.s32 %s11, 2
      // Predicated region
      $region49: #{tpu_custom_call.1} parent=47 // pred_check
        %p441 = pneg %p150
      $region50: #{tpu_custom_call.1} parent=47 // pred_check_branch
        %443 = sbr.rel (%p441) target = $region52
      $region51: #{tpu_custom_call.1} parent=47 // pred_region
        %s444 = smul.u32 2, %s17
        %p445 = scmp.lt.s32.totalorder %s444, 5
        %s446 = scalar_select %p445, %s444, 5
        %s447 = smul.addr %s446, 8
        %s448 = scalar_lea.vmem %s5, %s447
      $region52: #{tpu_custom_call.1} parent=47 // pred_fallthru
        _
    $region48: #{tpu_custom_call.1} parent=5 // pred_fallthru
      _
  $region6: #{tpu_custom_call.1} parent=0 // loop_footer
    %s15 = sadd.s32 1, %s11
  $region7: #{tpu_custom_call.1} parent=0 // loop_footer_branch
    %10 = sbr.rel target = $region3
  $region8: #{tpu_custom_call.1} parent=0 // loop_exit
    _

</llo_original>
